<compile_context>
chip_gen: v7x
topology: tpu7x:2x2x1
jax: 0.10.0
libtpu: 0.0.40
codegen_flags: <defaults>
</compile_context>

<pallas_src>
import jax
import jax.numpy as jnp
from jax import lax
from jax.experimental import pallas as pl
from jax.experimental.pallas import tpu as pltpu


K = 3  # ConvTranspose1d kernel size (fixed by the module spec)


# ---------------------------------------------------------------- kernel ----

def fused_ct_bn_relu_ct_kernel(x_ref, w1_ref, w2_ref, p_ref, out_ref):
    # x_ref  : (N, Cin, L)      f32 input, PyTorch channel-first (NCL) layout
    # w1_ref : (Cout, K*Cin)    bf16 stacked correlation taps of conv1
    # w2_ref : (Cout, K*Cout)   bf16 stacked correlation taps of conv2
    # p_ref  : (3, Cout, 1)     f32 rows = [bn_scale, bn_shift(+folded conv1 bias), conv2 bias]
    # out_ref: (N, Cout, L+4)   f32
    N, Cin, L = x_ref.shape
    Cout = out_ref.shape[1]
    L1 = L + (K - 1)           # conv1 output length
    L2 = L1 + (K - 1)          # conv2 output length

    x = x_ref[...]                                        # (N, Cin, L)
    zx = jnp.zeros((Cin, K - 1), jnp.float32)

    # ---- conv1: im2col over K taps AND N batches -> one MXU dot
    rhs1_cols = []
    for n in range(N):                                    # N is tiny & static
        xp = jnp.concatenate([zx, x[n], zx], axis=1)      # (Cin, L + 2(K-1))
        rhs1_cols.append(
            jnp.concatenate([xp[:, k:k + L1] for k in range(K)], axis=0))  # (K*Cin, L1)
    rhs1 = jnp.concatenate(rhs1_cols, axis=1).astype(jnp.bfloat16)          # (K*Cin, N*L1)
    acc1 = jnp.dot(w1_ref[...], rhs1,
                   preferred_element_type=jnp.float32)    # (Cout, N*L1) f32

    # ---- bn1 (eval mode; conv1 bias folded into shift) + relu1, one slab
    # TODO(synk): BatchNorm1d is implemented with running statistics
    # (inference mode); training-mode batch statistics are not computed.
    h = jnp.maximum(acc1 * p_ref[0] + p_ref[1], 0.0)      # (Cout, N*L1) f32

    # ---- conv2: same im2col trick on the hidden activation -> one MXU dot
    zh = jnp.zeros((Cout, K - 1), jnp.float32)
    rhs2_cols = []
    for n in range(N):
        hp = jnp.concatenate([zh, h[:, n * L1:(n + 1) * L1], zh], axis=1)   # (Cout, L1 + 2(K-1))
        rhs2_cols.append(
            jnp.concatenate([hp[:, k:k + L2] for k in range(K)], axis=0))  # (K*Cout, L2)
    rhs2 = jnp.concatenate(rhs2_cols, axis=1).astype(jnp.bfloat16)          # (K*Cout, N*L2)
    acc2 = jnp.dot(w2_ref[...], rhs2,
                   preferred_element_type=jnp.float32) + p_ref[2]           # (Cout, N*L2)

    # ---- write back in PyTorch (N, Cout, L2) layout (N static, 2 stores)
    for n in range(N):
        out_ref[n] = acc2[:, n * L2:(n + 1) * L2]


# ---------------------------------------------------------------- wrapper ---

def _full_spec(shape):
    # whole-array block (full dims satisfy the (8,128) divisibility rule)
    return pl.BlockSpec(shape, lambda i, _nd=len(shape): (0,) * _nd)


def prep_params(params, eps=1e-5):
    """One-time weight-side prep (runs at init, NOT on the per-call path)."""
    def stack_taps(w_ct):
        # ConvTranspose1d weight (Cin, Cout, K) -> stacked correlation taps
        # W[o, k*Cin + i] = w_ct[i, o, K-1-k]
        taps = jnp.transpose(jnp.flip(w_ct, axis=2), (2, 1, 0))   # (K, Cout, Cin)
        Kk, Cout, Cin = taps.shape
        return jnp.transpose(taps, (1, 0, 2)).reshape(Cout, Kk * Cin)

    w1s = stack_taps(params["ct1_w"]).astype(jnp.bfloat16)        # (Cout, K*Cin)
    w2s = stack_taps(params["ct2_w"]).astype(jnp.bfloat16)        # (Cout, K*Cout)
    scale = params["bn_gamma"] / jnp.sqrt(params["bn_var"] + eps)
    shift = params["bn_beta"] - params["bn_mean"] * scale + params["ct1_b"] * scale
    packed = jnp.stack([scale, shift, params["ct2_b"]], axis=0)[:, :, None]
    return w1s, w2s, packed.astype(jnp.float32)


def make_bn_after_conv_transpose1d(params, eps=1e-5):
    """Returns a jitted forward(x) with all weight prep hoisted out of it."""
    w1s, w2s, packed = prep_params(params, eps)
    Cout = w1s.shape[0]

    @jax.jit
    def forward(x):                     # x: (N, 10, L) f32, PyTorch NCL layout
        N, Cin, L = x.shape
        L2 = L + 2 * (K - 1)
        return pl.pallas_call(
            fused_ct_bn_relu_ct_kernel,
            out_shape=jax.ShapeDtypeStruct((N, Cout, L2), jnp.float32),
            grid=(1,),
            in_specs=[
                _full_spec((N, Cin, L)),
                _full_spec(w1s.shape),
                _full_spec(w2s.shape),
                _full_spec(packed.shape),
            ],
            out_specs=_full_spec((N, Cout, L2)),
            compiler_params=pltpu.CompilerParams(
                dimension_semantics=("arbitrary",)),
        )(x, w1s, w2s, packed)

    return forward


# -------------------------------------------------------------- reference ---

def _conv_transpose1d_ref(x, w, b):
    """ConvTranspose1d (stride=1, padding=0, dilation=1) from its definition."""
    N, Cin, L = x.shape
    _, Cout, Kk = w.shape
    y = jnp.zeros((N, Cout, L + Kk - 1), jnp.float32)
    for k in range(Kk):
        tap = jnp.einsum("ncl,co->nol", x, w[:, :, k],
                         precision=lax.Precision.HIGHEST)
        y = y.at[:, :, k:k + L].add(tap)
    return y + b[None, :, None]


def reference_forward(x, params, eps=1e-5):
    y = _conv_transpose1d_ref(x, params["ct1_w"], params["ct1_b"])
    scale = params["bn_gamma"] / jnp.sqrt(params["bn_var"] + eps)
    shift = params["bn_beta"] - params["bn_mean"] * scale
    y = y * scale[None, :, None] + shift[None, :, None]       # BatchNorm1d (eval)
    y = jnp.maximum(y, 0.0)                                   # ReLU
    y = _conv_transpose1d_ref(y, params["ct2_w"], params["ct2_b"])
    return y


# ------------------------------------------------------------------- main ---

if __name__ == "__main__":
    key = jax.random.PRNGKey(0)
    ks = jax.random.split(key, 9)

    N, C, L = 2, 10, 16          # ConvTranspose1d(10, 10, 3): L -> L+2 -> L+4

    x = jax.random.normal(ks[0], (N, C, L), dtype=jnp.float32)

    params = {
        # PyTorch ConvTranspose1d weight layout: (Cin, Cout, K)
        "ct1_w": 0.15 * jax.random.normal(ks[1], (C, C, K), jnp.float32),
        "ct1_b": 0.10 * jax.random.normal(ks[2], (C,), jnp.float32),
        "ct2_w": 0.15 * jax.random.normal(ks[3], (C, C, K), jnp.float32),
        "ct2_b": 0.10 * jax.random.normal(ks[4], (C,), jnp.float32),
        "bn_gamma": 1.0 + 0.1 * jax.random.normal(ks[5], (C,), jnp.float32),
        "bn_beta": 0.1 * jax.random.normal(ks[6], (C,), jnp.float32),
        "bn_mean": 0.1 * jax.random.normal(ks[7], (C,), jnp.float32),
        "bn_var": jax.random.uniform(ks[8], (C,), jnp.float32, 0.5, 1.5),
    }

    forward = make_bn_after_conv_transpose1d(params)   # weight prep happens once here

    out = jax.block_until_ready(forward(x))
    ref = jax.block_until_ready(reference_forward(x, params))

    assert out.shape == (N, C, L + 4), out.shape
    # bf16 MXU operands (f32 accumulate / f32 epilogue) -> loose-ish tolerance
    assert jnp.allclose(out, ref, rtol=2e-2, atol=2e-2), (
        "mismatch vs JAX reference; max abs err = "
        + str(float(jnp.max(jnp.abs(out - ref)))))
    print("KERNEL_OK")
</pallas_src>

<mosaic_0001>
module attributes {stable_mosaic.version = 11 : i64} {
  func.func @fused_ct_bn_relu_ct_kernel(%arg0: i32, %arg1: memref<2x10x16xf32, #tpu.memory_space<vmem>>, %arg2: memref<10x30xbf16, #tpu.memory_space<vmem>>, %arg3: memref<10x30xbf16, #tpu.memory_space<vmem>>, %arg4: memref<3x10x1xf32, #tpu.memory_space<vmem>>, %arg5: memref<2x10x20xf32, #tpu.memory_space<vmem>>) attributes {dimension_semantics = [#tpu.dimension_semantics<arbitrary>], iteration_bounds = array<i64: 1>, scalar_prefetch = 0 : i64, scratch_operands = 0 : i64, tpu.core_type = #tpu.core_type<tc>, window_params = [{pipeline_mode = #tpu.pipeline_mode<synchronous>, transform_indices = @transform_0, window_bounds = array<i64: 2, 10, 16>}, {pipeline_mode = #tpu.pipeline_mode<synchronous>, transform_indices = @transform_1, window_bounds = array<i64: 10, 30>}, {pipeline_mode = #tpu.pipeline_mode<synchronous>, transform_indices = @transform_2, window_bounds = array<i64: 10, 30>}, {pipeline_mode = #tpu.pipeline_mode<synchronous>, transform_indices = @transform_3, window_bounds = array<i64: 3, 10, 1>}, {pipeline_mode = #tpu.pipeline_mode<synchronous>, transform_indices = @transform_4, window_bounds = array<i64: 2, 10, 20>}]} {
    %c0 = arith.constant 0 : index
    %c0_0 = arith.constant 0 : index
    %c0_1 = arith.constant 0 : index
    %0 = vector.load %arg1[%c0, %c0_0, %c0_1] : memref<2x10x16xf32, #tpu.memory_space<vmem>>, vector<2x10x16xf32>
    %cst = arith.constant 0.000000e+00 : f32
    %1 = vector.broadcast %cst : f32 to vector<10x2xf32>
    %2 = vector.extract_strided_slice %0 {offsets = [0, 0, 0], sizes = [1, 10, 16], strides = [1, 1, 1]} : vector<2x10x16xf32> to vector<1x10x16xf32>
    %3 = vector.shape_cast %2 : vector<1x10x16xf32> to vector<10x16xf32>
    %4 = tpu.concatenate %1, %3, %1 in 1 : vector<10x2xf32>, vector<10x16xf32>, vector<10x2xf32> -> vector<10x20xf32>
    %5 = vector.extract_strided_slice %4 {offsets = [0, 0], sizes = [10, 18], strides = [1, 1]} : vector<10x20xf32> to vector<10x18xf32>
    %6 = vector.extract_strided_slice %4 {offsets = [0, 1], sizes = [10, 18], strides = [1, 1]} : vector<10x20xf32> to vector<10x18xf32>
    %7 = vector.extract_strided_slice %4 {offsets = [0, 2], sizes = [10, 18], strides = [1, 1]} : vector<10x20xf32> to vector<10x18xf32>
    %8 = tpu.concatenate %5, %6, %7 in 0 : vector<10x18xf32>, vector<10x18xf32>, vector<10x18xf32> -> vector<30x18xf32>
    %9 = vector.extract_strided_slice %0 {offsets = [1, 0, 0], sizes = [1, 10, 16], strides = [1, 1, 1]} : vector<2x10x16xf32> to vector<1x10x16xf32>
    %10 = vector.shape_cast %9 : vector<1x10x16xf32> to vector<10x16xf32>
    %11 = tpu.concatenate %1, %10, %1 in 1 : vector<10x2xf32>, vector<10x16xf32>, vector<10x2xf32> -> vector<10x20xf32>
    %12 = vector.extract_strided_slice %11 {offsets = [0, 0], sizes = [10, 18], strides = [1, 1]} : vector<10x20xf32> to vector<10x18xf32>
    %13 = vector.extract_strided_slice %11 {offsets = [0, 1], sizes = [10, 18], strides = [1, 1]} : vector<10x20xf32> to vector<10x18xf32>
    %14 = vector.extract_strided_slice %11 {offsets = [0, 2], sizes = [10, 18], strides = [1, 1]} : vector<10x20xf32> to vector<10x18xf32>
    %15 = tpu.concatenate %12, %13, %14 in 0 : vector<10x18xf32>, vector<10x18xf32>, vector<10x18xf32> -> vector<30x18xf32>
    %16 = tpu.concatenate %8, %15 in 1 : vector<30x18xf32>, vector<30x18xf32> -> vector<30x36xf32>
    %17 = arith.truncf %16 : vector<30x36xf32> to vector<30x36xbf16>
    %c0_2 = arith.constant 0 : index
    %c0_3 = arith.constant 0 : index
    %18 = vector.load %arg2[%c0_2, %c0_3] : memref<10x30xbf16, #tpu.memory_space<vmem>>, vector<10x30xbf16>
    %cst_4 = arith.constant dense<0.000000e+00> : vector<10x36xf32>
    %19 = tpu.matmul %18, %17, %cst_4 {dimension_numbers = #tpu.dot_dimension_numbers<[1], [0], [0], [1], [0, 0, 1, 1], [], []>} : vector<10x30xbf16>, vector<30x36xbf16>, vector<10x36xf32> -> vector<10x36xf32>
    %c0_5 = arith.constant 0 : index
    %c0_6 = arith.constant 0 : index
    %c0_7 = arith.constant 0 : index
    %20 = vector.load %arg4[%c0_5, %c0_6, %c0_7] : memref<3x10x1xf32, #tpu.memory_space<vmem>>, vector<1x10x1xf32>
    %21 = vector.shape_cast %20 : vector<1x10x1xf32> to vector<10x1xf32>
    %22 = vector.broadcast %21 : vector<10x1xf32> to vector<10x36xf32>
    %23 = arith.mulf %19, %22 : vector<10x36xf32>
    %c1 = arith.constant 1 : index
    %c0_8 = arith.constant 0 : index
    %c0_9 = arith.constant 0 : index
    %24 = vector.load %arg4[%c1, %c0_8, %c0_9] : memref<3x10x1xf32, #tpu.memory_space<vmem>>, vector<1x10x1xf32>
    %25 = vector.shape_cast %24 : vector<1x10x1xf32> to vector<10x1xf32>
    %26 = vector.broadcast %25 : vector<10x1xf32> to vector<10x36xf32>
    %27 = arith.addf %23, %26 : vector<10x36xf32>
    %cst_10 = arith.constant 0.000000e+00 : f32
    %28 = vector.broadcast %cst_10 : f32 to vector<10x36xf32>
    %29 = arith.maximumf %27, %28 : vector<10x36xf32>
    %cst_11 = arith.constant 0.000000e+00 : f32
    %30 = vector.broadcast %cst_11 : f32 to vector<10x2xf32>
    %31 = vector.extract_strided_slice %29 {offsets = [0, 0], sizes = [10, 18], strides = [1, 1]} : vector<10x36xf32> to vector<10x18xf32>
    %32 = tpu.concatenate %30, %31, %30 in 1 : vector<10x2xf32>, vector<10x18xf32>, vector<10x2xf32> -> vector<10x22xf32>
    %33 = vector.extract_strided_slice %32 {offsets = [0, 0], sizes = [10, 20], strides = [1, 1]} : vector<10x22xf32> to vector<10x20xf32>
    %34 = vector.extract_strided_slice %32 {offsets = [0, 1], sizes = [10, 20], strides = [1, 1]} : vector<10x22xf32> to vector<10x20xf32>
    %35 = vector.extract_strided_slice %32 {offsets = [0, 2], sizes = [10, 20], strides = [1, 1]} : vector<10x22xf32> to vector<10x20xf32>
    %36 = tpu.concatenate %33, %34, %35 in 0 : vector<10x20xf32>, vector<10x20xf32>, vector<10x20xf32> -> vector<30x20xf32>
    %37 = vector.extract_strided_slice %29 {offsets = [0, 18], sizes = [10, 18], strides = [1, 1]} : vector<10x36xf32> to vector<10x18xf32>
    %38 = tpu.concatenate %30, %37, %30 in 1 : vector<10x2xf32>, vector<10x18xf32>, vector<10x2xf32> -> vector<10x22xf32>
    %39 = vector.extract_strided_slice %38 {offsets = [0, 0], sizes = [10, 20], strides = [1, 1]} : vector<10x22xf32> to vector<10x20xf32>
    %40 = vector.extract_strided_slice %38 {offsets = [0, 1], sizes = [10, 20], strides = [1, 1]} : vector<10x22xf32> to vector<10x20xf32>
    %41 = vector.extract_strided_slice %38 {offsets = [0, 2], sizes = [10, 20], strides = [1, 1]} : vector<10x22xf32> to vector<10x20xf32>
    %42 = tpu.concatenate %39, %40, %41 in 0 : vector<10x20xf32>, vector<10x20xf32>, vector<10x20xf32> -> vector<30x20xf32>
    %43 = tpu.concatenate %36, %42 in 1 : vector<30x20xf32>, vector<30x20xf32> -> vector<30x40xf32>
    %44 = arith.truncf %43 : vector<30x40xf32> to vector<30x40xbf16>
    %c0_12 = arith.constant 0 : index
    %c0_13 = arith.constant 0 : index
    %45 = vector.load %arg3[%c0_12, %c0_13] : memref<10x30xbf16, #tpu.memory_space<vmem>>, vector<10x30xbf16>
    %cst_14 = arith.constant dense<0.000000e+00> : vector<10x40xf32>
    %46 = tpu.matmul %45, %44, %cst_14 {dimension_numbers = #tpu.dot_dimension_numbers<[1], [0], [0], [1], [0, 0, 1, 1], [], []>} : vector<10x30xbf16>, vector<30x40xbf16>, vector<10x40xf32> -> vector<10x40xf32>
    %c2 = arith.constant 2 : index
    %c0_15 = arith.constant 0 : index
    %c0_16 = arith.constant 0 : index
    %47 = vector.load %arg4[%c2, %c0_15, %c0_16] : memref<3x10x1xf32, #tpu.memory_space<vmem>>, vector<1x10x1xf32>
    %48 = vector.shape_cast %47 : vector<1x10x1xf32> to vector<10x1xf32>
    %49 = vector.broadcast %48 : vector<10x1xf32> to vector<10x40xf32>
    %50 = arith.addf %46, %49 : vector<10x40xf32>
    %51 = vector.extract_strided_slice %50 {offsets = [0, 0], sizes = [10, 20], strides = [1, 1]} : vector<10x40xf32> to vector<10x20xf32>
    %c0_17 = arith.constant 0 : index
    %c0_18 = arith.constant 0 : index
    %c0_19 = arith.constant 0 : index
    %52 = vector.load %arg5[%c0_17, %c0_18, %c0_19] : memref<2x10x20xf32, #tpu.memory_space<vmem>>, vector<1x10x20xf32>
    %53 = vector.shape_cast %52 : vector<1x10x20xf32> to vector<10x20xf32>
    %54 = vector.shape_cast %51 : vector<10x20xf32> to vector<1x10x20xf32>
    tpu.vector_store %arg5[%c0_17, %c0_18, %c0_19], %54 {strides = array<i32>} : memref<2x10x20xf32, #tpu.memory_space<vmem>>, vector<1x10x20xf32>,
    %55 = vector.extract_strided_slice %50 {offsets = [0, 20], sizes = [10, 20], strides = [1, 1]} : vector<10x40xf32> to vector<10x20xf32>
    %c1_20 = arith.constant 1 : index
    %c0_21 = arith.constant 0 : index
    %c0_22 = arith.constant 0 : index
    %56 = vector.load %arg5[%c1_20, %c0_21, %c0_22] : memref<2x10x20xf32, #tpu.memory_space<vmem>>, vector<1x10x20xf32>
    %57 = vector.shape_cast %56 : vector<1x10x20xf32> to vector<10x20xf32>
    %58 = vector.shape_cast %55 : vector<10x20xf32> to vector<1x10x20xf32>
    tpu.vector_store %arg5[%c1_20, %c0_21, %c0_22], %58 {strides = array<i32>} : memref<2x10x20xf32, #tpu.memory_space<vmem>>, vector<1x10x20xf32>,
    return
  }
  func.func @transform_0(%arg0: i32) -> (i32, i32, i32) {
    %c0_i32 = arith.constant 0 : i32
    %c0_i32_0 = arith.constant 0 : i32
    %c0_i32_1 = arith.constant 0 : i32
    %c0_i32_2 = arith.constant 0 : i32
    return %c0_i32, %c0_i32_0, %c0_i32_1 : i32, i32, i32
  }
  func.func @transform_1(%arg0: i32) -> (i32, i32) {
    %c0_i32 = arith.constant 0 : i32
    %c0_i32_0 = arith.constant 0 : i32
    %c0_i32_1 = arith.constant 0 : i32
    return %c0_i32, %c0_i32_0 : i32, i32
  }
  func.func @transform_2(%arg0: i32) -> (i32, i32) {
    %c0_i32 = arith.constant 0 : i32
    %c0_i32_0 = arith.constant 0 : i32
    %c0_i32_1 = arith.constant 0 : i32
    return %c0_i32, %c0_i32_0 : i32, i32
  }
  func.func @transform_3(%arg0: i32) -> (i32, i32, i32) {
    %c0_i32 = arith.constant 0 : i32
    %c0_i32_0 = arith.constant 0 : i32
    %c0_i32_1 = arith.constant 0 : i32
    %c0_i32_2 = arith.constant 0 : i32
    return %c0_i32, %c0_i32_0, %c0_i32_1 : i32, i32, i32
  }
  func.func @transform_4(%arg0: i32) -> (i32, i32, i32) {
    %c0_i32 = arith.constant 0 : i32
    %c0_i32_0 = arith.constant 0 : i32
    %c0_i32_1 = arith.constant 0 : i32
    %c0_i32_2 = arith.constant 0 : i32
    return %c0_i32, %c0_i32_0, %c0_i32_1 : i32, i32, i32
  }
}

</mosaic_0001>

<llo_original>
// kernel: forward.1
$region0: #{forward.1}
  #allocation0 [shape = 'u32[]', space=smem, size = 0x4, offset = 0x4, fixed_abs, tag = 'smem constant byte address 0x4 - core index']
  #allocation1 [shape = 'u32[144,128]{1,0:T(1,128)}', space=vmem, size = 0x12000, scoped, tag = 'internal scratch']
  %s0 = inlined_call_operand.vmem [shape: f32[2,10,16], index: 0, kind: input, shape index: {}]
  %s1 = inlined_call_operand.hbm [shape: bf16[10,30], index: 1, kind: input, shape index: {}]
  %s2 = inlined_call_operand.vmem [shape: bf16[10,30], index: 2, kind: input, shape index: {}]
  %s3 = inlined_call_operand.vmem [shape: f32[3,10,1], index: 3, kind: input, shape index: {}]
  %s4 = inlined_call_operand.vmem [shape: f32[2,10,20], index: 4, kind: output, shape index: {}]
  %s5 = sld [smem:[#allocation0]]
  $region30: #{forward.1} parent=0
    _
  %s7 = ssub.s32 1, %s5
  %s8 = scalar_select 0, %s7, %s5
  $region1: #{forward.1} parent=0
    #allocation2 [shape = 'u8[4096]{0}', space=vmem, size = 0x1000, scoped, tag = 'input window, operand 1, single buffered']
    #allocation3 [shape = 's32[1]{0}', space=sflag, size = 0x4, scoped, tag = 'scoped memory for forward.1']
    %9 = vsyncpa [#allocation3], 0
    // Predicated region
    $region2: #{forward.1} parent=1 // pred_check
      _
    $region3: #{forward.1} parent=1 // pred_check_branch
      %11 = sbr.rel (0) target = $region5
    $region4: #{forward.1} parent=1 // pred_region
      _
    $region5: #{forward.1} parent=1 // pred_fallthru
      _
    // Predicated region
    $region6: #{forward.1} parent=1 // pred_check
      _
    $region7: #{forward.1} parent=1 // pred_check_branch
      %13 = sbr.rel (0) target = $region9
    $region8: #{forward.1} parent=1 // pred_region
      %s15 = ssub.s32 128, 128
      %16 = vsyncadd [#allocation3], %s15
      %s17 = sshll.u32 [#allocation2], 4
      %s18 = int_to_ptr.vmem [resolvable:$true] %s17
      %23 = dma.hbm_to_vmem [thread:$0]  %s1, 128, %s18, [#allocation3], 64, 64, 4
    $region9: #{forward.1} parent=1 // pred_fallthru
      _
    // Predicated region
    $region10: #{forward.1} parent=1 // pred_check
      _
    $region11: #{forward.1} parent=1 // pred_check_branch
      %25 = sbr.rel (0) target = $region13
    $region12: #{forward.1} parent=1 // pred_region
      _
    $region13: #{forward.1} parent=1 // pred_fallthru
      _
    // Predicated region
    $region14: #{forward.1} parent=1 // pred_check
      _
    $region15: #{forward.1} parent=1 // pred_check_branch
      %27 = sbr.rel (0) target = $region17
    $region16: #{forward.1} parent=1 // pred_region
      _
    $region17: #{forward.1} parent=1 // pred_fallthru
      _
    // Predicated region
    $region18: #{forward.1} parent=1 // pred_check
      _
    $region19: #{forward.1} parent=1 // pred_check_branch
      %29 = sbr.rel (0) target = $region21
    $region20: #{forward.1} parent=1 // pred_region
      %30 = dma.done [#allocation3], 128
    $region21: #{forward.1} parent=1 // pred_fallthru
      _
    %v32 = vld [vmem:[%s0] sm:$0xff]
    %v33 = vld [vmem:[%s0 + $0x8] sm:$0x3]
    %v34 = vld [vmem:[%s0 + $0x10] sm:$0xff]
    %v35 = vld [vmem:[%s0 + $0x18] sm:$0x3]
    %38 = vrot.lane.b32.xlu0 %v32, 2
    %v39 = vpop.permute.xlu0 %38
    %40 = vrot.lane.b32.xlu0 %v33, 2
    %v41 = vpop.permute.xlu0 %40
    %vm44 = vcmask 15360
    %v45 = vsel %vm44, 0.0, %v39
    %v46 = vsel %vm44, 0.0, %v41
    %vm47 = vcmask 146432
    %v48 = vsel %vm47, %v45, 0.0
    %v49 = vsel %vm47, %v46, 0.0
    %vm52 = vcmask 1041408
    %v53 = vrot.slane %v48, 6
    %v54 = vrot.slane %v49, 6
    %v55 = vsel %vm52, %v53, %v54
    %56 = vrot.lane.b32.xlu0 %v53, 127
    %v57 = vpop.permute.xlu0 %56
    %58 = vrot.lane.b32.xlu0 %v55, 127
    %v59 = vpop.permute.xlu0 %58
    %vm62 = vcmask 1043456
    %v63 = vrot.slane %v48, 4
    %v64 = vrot.slane %v49, 4
    %v65 = vsel %vm62, %v63, %v64
    %66 = vrot.lane.b32.xlu0 %v63, 126
    %v67 = vpop.permute.xlu0 %66
    %68 = vrot.lane.b32.xlu0 %v65, 126
    %v69 = vpop.permute.xlu0 %68
    %v72 = vsel %vm52, %v49, %v57
    %v73 = vsel %vm62, %v59, %v67
    %76 = vrot.lane.b32.xlu0 %v34, 2
    %v77 = vpop.permute.xlu0 %76
    %78 = vrot.lane.b32.xlu0 %v35, 2
    %v79 = vpop.permute.xlu0 %78
    %v82 = vsel %vm44, 0.0, %v77
    %v83 = vsel %vm44, 0.0, %v79
    %v84 = vsel %vm47, %v82, 0.0
    %v85 = vsel %vm47, %v83, 0.0
    %v88 = vrot.slane %v84, 6
    %v89 = vrot.slane %v85, 6
    %v90 = vsel %vm52, %v88, %v89
    %91 = vrot.lane.b32.xlu0 %v88, 127
    %v92 = vpop.permute.xlu0 %91
    %93 = vrot.lane.b32.xlu0 %v90, 127
    %v94 = vpop.permute.xlu0 %93
    %v97 = vrot.slane %v84, 4
    %v98 = vrot.slane %v85, 4
    %v99 = vsel %vm62, %v97, %v98
    %100 = vrot.lane.b32.xlu0 %v97, 126
    %v101 = vpop.permute.xlu0 %100
    %102 = vrot.lane.b32.xlu0 %v99, 126
    %v103 = vpop.permute.xlu0 %102
    %v105 = vsel %vm52, %v85, %v92
    %v106 = vsel %vm62, %v94, %v101
    %109 = vrot.lane.b32.xlu0 %v84, 18
    %v110 = vpop.permute.xlu0 %109
    %111 = vrot.lane.b32.xlu0 %v105, 18
    %v112 = vpop.permute.xlu0 %111
    %113 = vrot.lane.b32.xlu0 %v106, 18
    %v114 = vpop.permute.xlu0 %113
    %115 = vrot.lane.b32.xlu0 %v103, 18
    %v116 = vpop.permute.xlu0 %115
    %v121 = vsel %vm47, %v48, %v110
    %v122 = vsel %vm47, %v72, %v112
    %v123 = vsel %vm47, %v73, %v114
    %v124 = vsel %vm47, %v69, %v116
    %v125 = vpack.c.bf16 %v122, %v121
    %v126 = vpack.c.bf16 %v124, %v123
    %v127 = vld [vmem:[#allocation2] sm:$0xf]
    %v128 = vld [vmem:[#allocation2 + $0x4] sm:$0x1]
    %v131 = vunpack.c.l.b16 %v127
    %v132 = vunpack.c.l.b16 %v128
    %v133 = vpack.c.b16 %v132, %v131
    %vm134 = vcmask 244736
    %v136 = vsel %vm134, %v133, 0
    %vm138 = vcmask 1046528
    %v140 = vsel %vm138, %v126, 0
    %142 = vmatprep.subr.bf16.mxu0 0
    %143 = vmatpush1.bf16.msra.mxu0 %v125
    %144 = vmatprep.subr.bf16.mxu0 0
    %145 = vmatpush1.bf16.msra.mxu0 %v140
    %146 = vmatprep.subr.bf16.mxu0 0
    %147 = vmatpush1.bf16.msra.mxu0 0
    %148 = vmatprep.subr.bf16.mxu0 0
    %149 = vmatpush1.bf16.msra.mxu0 0
    %150 = vmatprep.subr.bf16.mxu0 0
    %151 = vmatpush1.bf16.msra.mxu0 0
    %152 = vmatprep.subr.bf16.mxu0 0
    %153 = vmatpush1.bf16.msra.mxu0 0
    %154 = vmatprep.subr.bf16.mxu0 0
    %155 = vmatpush1.bf16.msra.mxu0 0
    %156 = vmatprep.subr.bf16.mxu0 0
    %157 = vmatpush1.bf16.msra.mxu0 0
    %158 = vmatprep.subr.bf16.mxu0 0
    %159 = vmatpush1.bf16.msra.mxu0 0
    %160 = vmatprep.subr.bf16.mxu0 0
    %161 = vmatpush1.bf16.msra.mxu0 0
    %162 = vmatprep.subr.bf16.mxu0 0
    %163 = vmatpush1.bf16.msra.mxu0 0
    %164 = vmatprep.subr.bf16.mxu0 0
    %165 = vmatpush1.bf16.msra.mxu0 0
    %166 = vmatprep.subr.bf16.mxu0 0
    %167 = vmatpush1.bf16.msra.mxu0 0
    %168 = vmatprep.subr.bf16.mxu0 0
    %169 = vmatpush1.bf16.msra.mxu0 0
    %170 = vmatprep.subr.bf16.mxu0 0
    %171 = vmatpush1.bf16.msra.mxu0 0
    %172 = vmatprep.subr.bf16.mxu0 0
    %173 = vmatpush1.bf16.msra.mxu0 0
    %174 = vmatprep.mubr.bf16.mxu0 0
    %175 = vmatmul.mubr.bf16.gmra.mrb[0].mxu0 %v136
    %v176 = vpop.f32.mrb[0].mxu0
    %v177 = vadd.f32 0.0, %v176
    %v178 = vpop.f32.mrb[0].mxu0
    %v179 = vpop.f32.mrb[0].mxu0
    %v180 = vadd.f32 0.0, %v179
    %v181 = vpop.f32.mrb[0].mxu0
    %182 = vdwg.mxu0
    %v183 = vld [vmem:[%s3] sm:$0xff]
    %v184 = vld [vmem:[%s3 + $0x8] sm:$0x3]
    %186 = vset.pattern.permute.xlu0 0
    %187 = vperm.xlu0 %186, %v183
    %v188 = vpop.permute.xlu0 %187
    %191 = vset.pattern.permute.xlu0 0
    %192 = vperm.xlu0 %191, %v184
    %v193 = vpop.permute.xlu0 %192
    %v195 = vmul.f32 %v177, %v188
    %v196 = vmul.f32 %v180, %v193
    %s197 = scalar_lea.vmem %s3, 16
    %v198 = vld [vmem:[%s197] sm:$0xff]
    %v199 = vld [vmem:[%s197 + $0x8] sm:$0x3]
    %201 = vset.pattern.permute.xlu0 0
    %202 = vperm.xlu0 %201, %v198
    %v203 = vpop.permute.xlu0 %202
    %206 = vset.pattern.permute.xlu0 0
    %207 = vperm.xlu0 %206, %v199
    %v208 = vpop.permute.xlu0 %207
    %v210 = vadd.f32 %v195, %v203
    %v211 = vadd.f32 %v196, %v208
    %v212 = vmax.f32 %v210, 0.0
    %v213 = vmax.f32 %v211, 0.0
    %216 = vrot.lane.b32.xlu0 %v212, 2
    %v217 = vpop.permute.xlu0 %216
    %218 = vrot.lane.b32.xlu0 %v213, 2
    %v219 = vpop.permute.xlu0 %218
    %v222 = vsel %vm44, 0.0, %v217
    %v223 = vsel %vm44, 0.0, %v219
    %vm224 = vcmask 162816
    %v225 = vsel %vm224, %v222, 0.0
    %v226 = vsel %vm224, %v223, 0.0
    %v229 = vrot.slane %v225, 6
    %v230 = vrot.slane %v226, 6
    %v231 = vsel %vm52, %v229, %v230
    %232 = vrot.lane.b32.xlu0 %v229, 127
    %v233 = vpop.permute.xlu0 %232
    %234 = vrot.lane.b32.xlu0 %v231, 127
    %v235 = vpop.permute.xlu0 %234
    %v238 = vrot.slane %v225, 4
    %v239 = vrot.slane %v226, 4
    %v240 = vsel %vm62, %v238, %v239
    %241 = vrot.lane.b32.xlu0 %v238, 126
    %v242 = vpop.permute.xlu0 %241
    %243 = vrot.lane.b32.xlu0 %v240, 126
    %v244 = vpop.permute.xlu0 %243
    %v247 = vsel %vm52, %v226, %v233
    %v248 = vsel %vm62, %v235, %v242
    %249 = vrot.lane.b32.xlu0 %v212, 112
    %v250 = vpop.permute.xlu0 %249
    %251 = vrot.lane.b32.xlu0 %v213, 112
    %v252 = vpop.permute.xlu0 %251
    %v255 = vsel %vm44, 0.0, %v250
    %v256 = vsel %vm44, 0.0, %v252
    %v257 = vsel %vm224, %v255, 0.0
    %v258 = vsel %vm224, %v256, 0.0
    %v261 = vrot.slane %v257, 6
    %v262 = vrot.slane %v258, 6
    %v263 = vsel %vm52, %v261, %v262
    %264 = vrot.lane.b32.xlu0 %v261, 127
    %v265 = vpop.permute.xlu0 %264
    %266 = vrot.lane.b32.xlu0 %v263, 127
    %v267 = vpop.permute.xlu0 %266
    %v270 = vrot.slane %v257, 4
    %v271 = vrot.slane %v258, 4
    %v272 = vsel %vm62, %v270, %v271
    %273 = vrot.lane.b32.xlu0 %v270, 126
    %v274 = vpop.permute.xlu0 %273
    %275 = vrot.lane.b32.xlu0 %v272, 126
    %v276 = vpop.permute.xlu0 %275
    %v278 = vsel %vm52, %v258, %v265
    %v279 = vsel %vm62, %v267, %v274
    %282 = vrot.lane.b32.xlu0 %v257, 20
    %v283 = vpop.permute.xlu0 %282
    %284 = vrot.lane.b32.xlu0 %v278, 20
    %v285 = vpop.permute.xlu0 %284
    %286 = vrot.lane.b32.xlu0 %v279, 20
    %v287 = vpop.permute.xlu0 %286
    %288 = vrot.lane.b32.xlu0 %v276, 20
    %v289 = vpop.permute.xlu0 %288
    %v294 = vsel %vm224, %v225, %v283
    %v295 = vsel %vm224, %v247, %v285
    %v296 = vsel %vm224, %v248, %v287
    %v297 = vsel %vm224, %v244, %v289
    %v298 = vpack.c.bf16 %v295, %v294
    %v299 = vpack.c.bf16 %v297, %v296
    %v300 = vld [vmem:[%s2] sm:$0xf]
    %v301 = vld [vmem:[%s2 + $0x4] sm:$0x1]
    %s302 = scalar_lea.vmem %s3, 32
    %v303 = vld [vmem:[%s302] sm:$0xff]
    %v304 = vld [vmem:[%s302 + $0x8] sm:$0x3]
    %306 = vset.pattern.permute.xlu0 0
    %307 = vperm.xlu0 %306, %v303
    %v308 = vpop.permute.xlu0 %307
    %311 = vset.pattern.permute.xlu0 0
    %312 = vperm.xlu0 %311, %v304
    %v313 = vpop.permute.xlu0 %312
    %v317 = vunpack.c.l.b16 %v300
    %v318 = vunpack.c.l.b16 %v301
    %v319 = vpack.c.b16 %v318, %v317
    %v321 = vsel %vm134, %v319, 0
    %v324 = vsel %vm138, %v299, 0
    %326 = vmatprep.subr.bf16.mxu0 0
    %327 = vmatpush1.bf16.msra.mxu0 %v298
    %328 = vmatprep.subr.bf16.mxu0 0
    %329 = vmatpush1.bf16.msra.mxu0 %v324
    %330 = vmatprep.subr.bf16.mxu0 0
    %331 = vmatpush1.bf16.msra.mxu0 0
    %332 = vmatprep.subr.bf16.mxu0 0
    %333 = vmatpush1.bf16.msra.mxu0 0
    %334 = vmatprep.subr.bf16.mxu0 0
    %335 = vmatpush1.bf16.msra.mxu0 0
    %336 = vmatprep.subr.bf16.mxu0 0
    %337 = vmatpush1.bf16.msra.mxu0 0
    %338 = vmatprep.subr.bf16.mxu0 0
    %339 = vmatpush1.bf16.msra.mxu0 0
    %340 = vmatprep.subr.bf16.mxu0 0
    %341 = vmatpush1.bf16.msra.mxu0 0
    %342 = vmatprep.subr.bf16.mxu0 0
    %343 = vmatpush1.bf16.msra.mxu0 0
    %344 = vmatprep.subr.bf16.mxu0 0
    %345 = vmatpush1.bf16.msra.mxu0 0
    %346 = vmatprep.subr.bf16.mxu0 0
    %347 = vmatpush1.bf16.msra.mxu0 0
    %348 = vmatprep.subr.bf16.mxu0 0
    %349 = vmatpush1.bf16.msra.mxu0 0
    %350 = vmatprep.subr.bf16.mxu0 0
    %351 = vmatpush1.bf16.msra.mxu0 0
    %352 = vmatprep.subr.bf16.mxu0 0
    %353 = vmatpush1.bf16.msra.mxu0 0
    %354 = vmatprep.subr.bf16.mxu0 0
    %355 = vmatpush1.bf16.msra.mxu0 0
    %356 = vmatprep.subr.bf16.mxu0 0
    %357 = vmatpush1.bf16.msra.mxu0 0
    %358 = vmatprep.mubr.bf16.mxu0 0
    %359 = vmatmul.mubr.bf16.gmra.mrb[0].mxu0 %v321
    %v360 = vpop.f32.mrb[0].mxu0
    %v361 = vadd.f32 %v308, %v360
    %v362 = vpop.f32.mrb[0].mxu0
    %v363 = vpop.f32.mrb[0].mxu0
    %v364 = vadd.f32 %v313, %v363
    %v365 = vpop.f32.mrb[0].mxu0
    %366 = vdwg.mxu0
    %367 = vst.msk [vmem:[%s4] sm:$0xff] %vm224, %v361
    %vm368 = vcmask 156672
    %369 = vst.msk [vmem:[%s4 + $0x8] sm:$0x3] %vm368, %v364
    %372 = vrot.lane.b32.xlu0 %v361, 108
    %v373 = vpop.permute.xlu0 %372
    %374 = vrot.lane.b32.xlu0 %v364, 108
    %v375 = vpop.permute.xlu0 %374
    %s378 = scalar_lea.vmem %s4, 16
    %379 = vst.msk [vmem:[%s378] sm:$0xff] %vm224, %v373
    %380 = vst.msk [vmem:[%s378 + $0x8] sm:$0x3] %vm368, %v375
    // Predicated region
    $region22: #{forward.1} parent=1 // pred_check
      _
    $region23: #{forward.1} parent=1 // pred_check_branch
      %382 = sbr.rel (0) target = $region25
    $region24: #{forward.1} parent=1 // pred_region
      _
    $region25: #{forward.1} parent=1 // pred_fallthru
      _
    // Predicated region
    $region26: #{forward.1} parent=1 // pred_check
      _
    $region27: #{forward.1} parent=1 // pred_check_branch
      %384 = sbr.rel (0) target = $region29
    $region28: #{forward.1} parent=1 // pred_region
      _
    $region29: #{forward.1} parent=1 // pred_fallthru
      _
    %385 = vsyncpa [#allocation3], 1

</llo_original>
